<compile_context>
chip_gen: v6e
topology: v6e:2x2x1
jax: 0.10.0
libtpu: 0.0.40
codegen_flags: <defaults>
</compile_context>

<pallas_src>
import jax
import jax.numpy as jnp
from jax.experimental import pallas as pl
from jax.experimental.pallas import tpu as pltpu


def _round_up(x, m):
    return ((x + m - 1) // m) * m


def _vmem_capacity_bytes():
    """Physical VMEM per TensorCore; conservative fallback = v7x's 64 MiB."""
    try:
        info = pltpu.get_tpu_info()
        cap = getattr(info, "vmem_capacity_bytes", None)
        if cap:
            return int(cap)
    except Exception:
        pass
    return 64 * 1024 * 1024


def _seq2seq_dense_kernel(x_ref, wt_ref, b_ref, o_ref):
    """y = x @ W^T + b + x  (residual linear over pose features).

    x_ref  : [TM, P] f32 input tile (residual read from here, full precision)
    wt_ref : [P,  P] weight pre-transposed to (in, out), compute dtype, resident
    b_ref  : [1,  P] bias row, f32, resident
    o_ref  : [TM, P] output tile, out dtype
    """
    x = x_ref[...]
    # Cast only the matmul operand; MXU accumulates in f32.
    y = jnp.dot(x.astype(wt_ref.dtype), wt_ref[...],
                preferred_element_type=jnp.float32)
    # Bias + residual epilogue in f32 (exact residual from the f32 x tile),
    # cast once on the way out.
    o_ref[...] = (y + b_ref[...] + x).astype(o_ref.dtype)


def seq2seq_dense_forward(x, weight, bias, *, compute_dtype=jnp.float32,
                          out_dtype=jnp.float32, max_tile_m=2048):
    """x: [B, S, P] f32, weight: [P, P] torch Linear layout [out, in], bias: [P].

    Returns [B, S, P] in `out_dtype`.  `compute_dtype=jnp.bfloat16` halves the
    weight read bytes and feeds the MXU bf16 on all of v5e/v6e/v7x (f32
    accumulate + f32 residual/bias epilogue inside the kernel).
    """
    B, S, P = x.shape
    M = B * S
    c_bytes = jnp.dtype(compute_dtype).itemsize
    o_bytes = jnp.dtype(out_dtype).itemsize

    # Generation-aware VMEM budget (v7x: 64 MiB physical; v5e/v6e: 128 MiB).
    cap = _vmem_capacity_bytes()
    if cap >= 96 * 1024 * 1024:          # v5e / v6e
        tile_budget, vmem_cap = 48 << 20, 64 << 20
    else:                                # v7x
        tile_budget, vmem_cap = 24 << 20, 36 << 20

    # Sublane packing: sub-32-bit tiles pack 16 rows per vreg.
    sub = 16 if min(c_bytes, o_bytes) < 4 else 8

    # Live VMEM: 2 f32 x-tiles + 2 out-tiles + double-buffered weight + bias.
    weight_bytes = 2 * P * P * c_bytes + 2 * P * 4
    per_row_bytes = P * (2 * 4 + 2 * o_bytes)
    tm_cap = max(sub, ((tile_budget - weight_bytes) // per_row_bytes) // sub * sub)
    TM = int(min(max_tile_m, tm_cap, _round_up(M, sub)))

    grid = (pl.cdiv(M, TM),)             # partial tail block is masked by Pallas

    x2d = x.reshape(M, P)                # metadata-only reshape; x stays f32
    w_t = weight.T.astype(compute_dtype)  # one-time P^2 transpose + cast (tiny)
    b2d = bias.reshape(1, P).astype(jnp.float32)

    vmem_bytes = (2 * TM * P * 4          # x tiles (f32)
                  + 2 * TM * P * o_bytes  # out tiles
                  + weight_bytes          # weight + bias buffers
                  + (2 << 20))            # compiler scratch slack
    vmem_bytes = int(min(max(vmem_bytes, 16 << 20), vmem_cap))

    cost = pl.CostEstimate(
        flops=2 * M * P * P,
        transcendentals=0,
        bytes_accessed=(M * P * 4          # read x (f32)
                        + P * P * c_bytes  # read W
                        + P * 4            # read bias
                        + M * P * o_bytes),  # write out
    )

    out2d = pl.pallas_call(
        _seq2seq_dense_kernel,
        out_shape=jax.ShapeDtypeStruct((M, P), out_dtype),
        grid_spec=pltpu.PrefetchScalarGridSpec(
            num_scalar_prefetch=0,
            grid=grid,
            in_specs=[
                pl.BlockSpec((TM, P), lambda i: (i, 0)),   # x marches over rows
                pl.BlockSpec((P, P), lambda i: (0, 0)),    # W^T resident
                pl.BlockSpec((1, P), lambda i: (0, 0)),    # bias resident
            ],
            out_specs=pl.BlockSpec((TM, P), lambda i: (i, 0)),
        ),
        compiler_params=pltpu.CompilerParams(
            # Rows are independent -> eligible for megacore sharding.
            # TODO(synk): confirm via xprof that this splits across v7x's 2 TCs;
            # if not, add an explicit leading core axis via pl.core_map.
            dimension_semantics=("parallel",),
            vmem_limit_bytes=vmem_bytes,
        ),
        cost_estimate=cost,
    )(x2d, w_t, b2d)

    return out2d.reshape(B, S, P)


if __name__ == "__main__":
    # Small shapes consistent with the module: pose sequences.
    batch, seq, pose_size = 2, 8, 32

    key = jax.random.PRNGKey(0)
    kx, kw, kb = jax.random.split(key, 3)

    x = jax.random.normal(kx, (batch, seq, pose_size), dtype=jnp.float32)
    # Deterministic synthetic parameters (torch.nn.Linear shapes: W [out,in], b [out]).
    weight = jax.random.normal(kw, (pose_size, pose_size), dtype=jnp.float32) * 0.05
    bias = jax.random.normal(kb, (pose_size,), dtype=jnp.float32) * 0.01

    # Reference in plain JAX (same math as torch Linear + residual).
    ref = jnp.einsum("bsp,op->bso", x, weight) + bias + x

    # f32 compute path: exact check.
    out = jax.block_until_ready(seq2seq_dense_forward(x, weight, bias))
    assert out.shape == (batch, seq, pose_size)
    assert jnp.allclose(out, ref, atol=1e-4, rtol=1e-4)

    # bf16 matmul + bf16 output path (f32 accumulation, f32 residual from the
    # original x): looser tolerance.
    out_bf16 = jax.block_until_ready(
        seq2seq_dense_forward(x, weight, bias,
                              compute_dtype=jnp.bfloat16,
                              out_dtype=jnp.bfloat16))
    assert out_bf16.shape == (batch, seq, pose_size)
    assert jnp.allclose(out_bf16.astype(jnp.float32), ref, atol=5e-2, rtol=5e-2)

    # Ragged case: M=21 not a multiple of the (forced small) tile and P=48 not
    # a multiple of 128 -> exercises multi-step grid + masked partial tail.
    b2, s2, p2 = 3, 7, 48
    x2 = jax.random.normal(kx, (b2, s2, p2), dtype=jnp.float32)
    w2 = jax.random.normal(kw, (p2, p2), dtype=jnp.float32) * 0.05
    bi2 = jax.random.normal(kb, (p2,), dtype=jnp.float32) * 0.01
    ref2 = jnp.einsum("bsp,op->bso", x2, w2) + bi2 + x2
    out2 = jax.block_until_ready(
        seq2seq_dense_forward(x2, w2, bi2, max_tile_m=8))
    assert out2.shape == (b2, s2, p2)
    assert jnp.allclose(out2, ref2, atol=1e-4, rtol=1e-4)

    print("KERNEL_OK")
</pallas_src>

<mosaic_0001>
module attributes {stable_mosaic.version = 11 : i64} {
  func.func @_seq2seq_dense_kernel(%arg0: i32, %arg1: memref<16x32xf32, #tpu.memory_space<vmem>>, %arg2: memref<32x32xf32, #tpu.memory_space<vmem>>, %arg3: memref<1x32xf32, #tpu.memory_space<vmem>>, %arg4: memref<16x32xf32, #tpu.memory_space<vmem>>) attributes {dimension_semantics = [#tpu.dimension_semantics<parallel>], iteration_bounds = array<i64: 1>, scalar_prefetch = 0 : i64, scratch_operands = 0 : i64, tpu.core_type = #tpu.core_type<tc>, window_params = [{transform_indices = @transform_0, window_bounds = array<i64: 16, 32>}, {pipeline_mode = #tpu.pipeline_mode<synchronous>, transform_indices = @transform_1, window_bounds = array<i64: 32, 32>}, {pipeline_mode = #tpu.pipeline_mode<synchronous>, transform_indices = @transform_2, window_bounds = array<i64: 1, 32>}, {transform_indices = @transform_3, window_bounds = array<i64: 16, 32>}]} {
    %c0 = arith.constant 0 : index
    %c0_0 = arith.constant 0 : index
    %0 = vector.load %arg1[%c0, %c0_0] : memref<16x32xf32, #tpu.memory_space<vmem>>, vector<16x32xf32>
    %c0_1 = arith.constant 0 : index
    %c0_2 = arith.constant 0 : index
    %1 = vector.load %arg2[%c0_1, %c0_2] : memref<32x32xf32, #tpu.memory_space<vmem>>, vector<32x32xf32>
    %cst = arith.constant dense<0.000000e+00> : vector<16x32xf32>
    %2 = tpu.matmul %0, %1, %cst {dimension_numbers = #tpu.dot_dimension_numbers<[1], [0], [0], [1], [0, 0, 1, 1], [], []>} : vector<16x32xf32>, vector<32x32xf32>, vector<16x32xf32> -> vector<16x32xf32>
    %c0_3 = arith.constant 0 : index
    %c0_4 = arith.constant 0 : index
    %3 = vector.load %arg3[%c0_3, %c0_4] : memref<1x32xf32, #tpu.memory_space<vmem>>, vector<1x32xf32>
    %4 = vector.broadcast %3 : vector<1x32xf32> to vector<16x32xf32>
    %5 = arith.addf %2, %4 : vector<16x32xf32>
    %6 = arith.addf %5, %0 : vector<16x32xf32>
    %c0_5 = arith.constant 0 : index
    %c0_6 = arith.constant 0 : index
    %7 = vector.load %arg4[%c0_5, %c0_6] : memref<16x32xf32, #tpu.memory_space<vmem>>, vector<16x32xf32>
    tpu.vector_store %arg4[%c0_5, %c0_6], %6 {strides = array<i32>} : memref<16x32xf32, #tpu.memory_space<vmem>>, vector<16x32xf32>,
    return
  }
  func.func @transform_0(%arg0: i32) -> (i32, i32) {
    %c0_i32 = arith.constant 0 : i32
    %c0_i32_0 = arith.constant 0 : i32
    return %arg0, %c0_i32 : i32, i32
  }
  func.func @transform_1(%arg0: i32) -> (i32, i32) {
    %c0_i32 = arith.constant 0 : i32
    %c0_i32_0 = arith.constant 0 : i32
    %c0_i32_1 = arith.constant 0 : i32
    return %c0_i32, %c0_i32_0 : i32, i32
  }
  func.func @transform_2(%arg0: i32) -> (i32, i32) {
    %c0_i32 = arith.constant 0 : i32
    %c0_i32_0 = arith.constant 0 : i32
    %c0_i32_1 = arith.constant 0 : i32
    return %c0_i32, %c0_i32_0 : i32, i32
  }
  func.func @transform_3(%arg0: i32) -> (i32, i32) {
    %c0_i32 = arith.constant 0 : i32
    %c0_i32_0 = arith.constant 0 : i32
    return %arg0, %c0_i32 : i32, i32
  }
}

</mosaic_0001>

<llo_original>
// kernel: tpu_custom_call.1
$region0: #{tpu_custom_call.1}
  #allocation0 [shape = 'u32[]', space=smem, size = 0x4, offset = 0x4, fixed_abs, tag = 'smem constant byte address 0x4 - core index']
  #allocation1 [shape = 'u32[144,128]{1,0:T(1,128)}', space=vmem, size = 0x12000, scoped, tag = 'internal scratch']
  %s0 = inlined_call_operand.hbm [shape: f32[16,32], index: 0, kind: input, shape index: {}]
  %s1 = inlined_call_operand.hbm [shape: f32[32,32], index: 1, kind: input, shape index: {}]
  %s2 = inlined_call_operand.vmem [shape: f32[1,32], index: 2, kind: input, shape index: {}]
  %s3 = inlined_call_operand.hbm [shape: f32[16,32], index: 3, kind: output, shape index: {}]
  %s4 = sld [smem:[#allocation0]]
  $region30: #{tpu_custom_call.1} parent=0
    _
  %s6 = ssub.s32 1, %s4
  %s7 = scalar_select 0, %s6, %s4
  $region1: #{tpu_custom_call.1} parent=0
    #allocation2 [shape = 'u8[8192]{0}', space=vmem, size = 0x2000, scoped, tag = 'input window, operand 0, single buffered']
    #allocation3 [shape = 's32[1]{0}', space=sflag, size = 0x4, scoped, tag = 'scoped memory for tpu_custom_call.1']
    #allocation4 [shape = 's32[1]{0}', space=sflag, size = 0x4, scoped, tag = 'scoped memory for tpu_custom_call.1']
    #allocation5 [shape = 'u8[16384]{0}', space=vmem, size = 0x4000, scoped, tag = 'input window, operand 1, single buffered']
    #allocation6 [shape = 's32[1]{0}', space=sflag, size = 0x4, scoped, tag = 'scoped memory for tpu_custom_call.1']
    #allocation7 [shape = 'u8[8192]{0}', space=vmem, size = 0x2000, scoped, tag = 'output window, operand 0, single buffered']
    %8 = vsyncpa [#allocation3], 0
    %9 = vsyncpa [#allocation6], 0
    %10 = vsyncpa [#allocation4], 0
    // Predicated region
    $region2: #{tpu_custom_call.1} parent=1 // pred_check
      _
    $region3: #{tpu_custom_call.1} parent=1 // pred_check_branch
      %12 = sbr.rel (0) target = $region5
    $region4: #{tpu_custom_call.1} parent=1 // pred_region
      %s14 = ssub.s32 256, 256
      %15 = vsyncadd [#allocation3], %s14
      %s16 = sshll.u32 [#allocation2], 4
      %s17 = int_to_ptr.vmem [resolvable:$true] %s16
      %22 = dma.hbm_to_vmem [thread:$0]  %s0, 256, %s17, [#allocation3], 128, 128, 8
    $region5: #{tpu_custom_call.1} parent=1 // pred_fallthru
      _
    // Predicated region
    $region6: #{tpu_custom_call.1} parent=1 // pred_check
      _
    $region7: #{tpu_custom_call.1} parent=1 // pred_check_branch
      %24 = sbr.rel (0) target = $region9
    $region8: #{tpu_custom_call.1} parent=1 // pred_region
      %s26 = ssub.s32 512, 512
      %27 = vsyncadd [#allocation6], %s26
      %s28 = sshll.u32 [#allocation5], 4
      %s29 = int_to_ptr.vmem [resolvable:$true] %s28
      %34 = dma.hbm_to_vmem [thread:$0]  %s1, 512, %s29, [#allocation6], 128, 128, 8
    $region9: #{tpu_custom_call.1} parent=1 // pred_fallthru
      _
    // Predicated region
    $region10: #{tpu_custom_call.1} parent=1 // pred_check
      _
    $region11: #{tpu_custom_call.1} parent=1 // pred_check_branch
      %36 = sbr.rel (0) target = $region13
    $region12: #{tpu_custom_call.1} parent=1 // pred_region
      _
    $region13: #{tpu_custom_call.1} parent=1 // pred_fallthru
      _
    // Predicated region
    $region14: #{tpu_custom_call.1} parent=1 // pred_check
      _
    $region15: #{tpu_custom_call.1} parent=1 // pred_check_branch
      %38 = sbr.rel (0) target = $region17
    $region16: #{tpu_custom_call.1} parent=1 // pred_region
      %39 = dma.done [#allocation3], 256
    $region17: #{tpu_custom_call.1} parent=1 // pred_fallthru
      _
    // Predicated region
    $region18: #{tpu_custom_call.1} parent=1 // pred_check
      _
    $region19: #{tpu_custom_call.1} parent=1 // pred_check_branch
      %41 = sbr.rel (0) target = $region21
    $region20: #{tpu_custom_call.1} parent=1 // pred_region
      %42 = dma.done [#allocation6], 512
    $region21: #{tpu_custom_call.1} parent=1 // pred_fallthru
      _
    %v43 = vld [vmem:[#allocation2] sm:$0xff]
    %v44 = vld [vmem:[#allocation2 + $0x8] sm:$0xff]
    %v45 = vld [vmem:[#allocation5] sm:$0xff]
    %v46 = vld [vmem:[#allocation5 + $0x8] sm:$0xff]
    %v47 = vld [vmem:[#allocation5 + $0x10] sm:$0xff]
    %v48 = vld [vmem:[#allocation5 + $0x18] sm:$0xff]
    %v49 = vld [vmem:[%s2] sm:$0x1]
    %v51 = vlaneseq
    %v52 = vshrl.u32 %v51, 7
    %v53 = vsub.s32 0, %v52
    %v54 = vrot.slane %v49, %v53
    %vm56 = vcmask 261120
    %v58 = vsel %vm56, %v43, 0
    %v61 = vsel %vm56, %v44, 0
    %63 = vmatprep.subr.mxu0 0.0
    %64 = vmatpush1.msra.mxu0 0.0
    %65 = vmatprep.subr.mxu0 0.0
    %66 = vmatpush1.msra.mxu0 0.0
    %67 = vmatprep.subr.mxu0 0.0
    %68 = vmatpush1.msra.mxu0 0.0
    %69 = vmatprep.subr.mxu0 0.0
    %70 = vmatpush1.msra.mxu0 0.0
    %71 = vmatprep.subr.mxu0 0.0
    %72 = vmatpush1.msra.mxu0 0.0
    %73 = vmatprep.subr.mxu0 0.0
    %74 = vmatpush1.msra.mxu0 0.0
    %75 = vmatprep.subr.mxu0 0.0
    %76 = vmatpush1.msra.mxu0 0.0
    %77 = vmatprep.subr.mxu0 0.0
    %78 = vmatpush1.msra.mxu0 0.0
    %79 = vmatprep.subr.mxu0 0.0
    %80 = vmatpush1.msra.mxu0 0.0
    %81 = vmatprep.subr.mxu0 0.0
    %82 = vmatpush1.msra.mxu0 0.0
    %83 = vmatprep.subr.mxu0 0.0
    %84 = vmatpush1.msra.mxu0 0.0
    %85 = vmatprep.subr.mxu0 0.0
    %86 = vmatpush1.msra.mxu0 0.0
    %87 = vmatprep.subr.mxu0 0.0
    %88 = vmatpush1.msra.mxu0 %v48
    %89 = vmatprep.subr.mxu0 0.0
    %90 = vmatpush1.msra.mxu0 %v47
    %91 = vmatprep.subr.mxu0 0.0
    %92 = vmatpush1.msra.mxu0 %v46
    %93 = vmatprep.subr.mxu0 0.0
    %94 = vmatpush1.msra.mxu0 %v45
    %95 = vmatprep.subr.mxu0 0.0
    %96 = vmatpush2.msra.mxu0 0.0
    %97 = vmatprep.subr.mxu0 0.0
    %98 = vmatpush2.msra.mxu0 0.0
    %99 = vmatprep.subr.mxu0 0.0
    %100 = vmatpush2.msra.mxu0 0.0
    %101 = vmatprep.subr.mxu0 0.0
    %102 = vmatpush2.msra.mxu0 0.0
    %103 = vmatprep.subr.mxu0 0.0
    %104 = vmatpush2.msra.mxu0 0.0
    %105 = vmatprep.subr.mxu0 0.0
    %106 = vmatpush2.msra.mxu0 0.0
    %107 = vmatprep.subr.mxu0 0.0
    %108 = vmatpush2.msra.mxu0 0.0
    %109 = vmatprep.subr.mxu0 0.0
    %110 = vmatpush2.msra.mxu0 0.0
    %111 = vmatprep.subr.mxu0 0.0
    %112 = vmatpush2.msra.mxu0 0.0
    %113 = vmatprep.subr.mxu0 0.0
    %114 = vmatpush2.msra.mxu0 0.0
    %115 = vmatprep.subr.mxu0 0.0
    %116 = vmatpush2.msra.mxu0 0.0
    %117 = vmatprep.subr.mxu0 0.0
    %118 = vmatpush2.msra.mxu0 0.0
    %119 = vmatprep.subr.mxu0 0.0
    %120 = vmatpush2.msra.mxu0 0.0
    %121 = vmatprep.subr.mxu0 0.0
    %122 = vmatpush2.msra.mxu0 0.0
    %123 = vmatprep.subr.mxu0 0.0
    %124 = vmatpush2.msra.mxu0 0.0
    %125 = vmatprep.subr.mxu0 0.0
    %126 = vmatpush2.msra.mxu0 0.0
    %127 = vmatprep.mubr.f32.mxu0 0.0
    %128 = vmatmul.mubr.f32.gmra.mxu0 %v58
    %v129 = vpop.f32.mrf.mxu0
    %v130 = vadd.f32 %v54, %v129
    %v131 = vpop.f32.mrf.mxu0
    %132 = vmatprep.mubr.f32.mxu0 0.0
    %133 = vmatmul.mubr.f32.gmra.mxu0 %v61
    %v134 = vpop.f32.mrf.mxu0
    %v135 = vadd.f32 %v54, %v134
    %v136 = vpop.f32.mrf.mxu0
    %137 = vdwg.mxu0
    %v138 = vadd.f32 %v130, %v43
    %v139 = vadd.f32 %v135, %v44
    %140 = vst.msk [vmem:[#allocation7] sm:$0xff] %vm56, %v138
    %141 = vst.msk [vmem:[#allocation7 + $0x8] sm:$0xff] %vm56, %v139
    // Predicated region
    $region22: #{tpu_custom_call.1} parent=1 // pred_check
      _
    $region23: #{tpu_custom_call.1} parent=1 // pred_check_branch
      %143 = sbr.rel (0) target = $region25
    $region24: #{tpu_custom_call.1} parent=1 // pred_region
      %s145 = ssub.s32 256, 256
      %146 = vsyncadd [#allocation4], %s145
      %s147 = sshll.u32 [#allocation7], 4
      %s148 = int_to_ptr.vmem [resolvable:$true] %s147
      %153 = dma.vmem_to_hbm [thread:$0]  %s148, 256, %s3, [#allocation4], 128, 128, 8
    $region25: #{tpu_custom_call.1} parent=1 // pred_fallthru
      _
    // Predicated region
    $region26: #{tpu_custom_call.1} parent=1 // pred_check
      _
    $region27: #{tpu_custom_call.1} parent=1 // pred_check_branch
      %155 = sbr.rel (0) target = $region29
    $region28: #{tpu_custom_call.1} parent=1 // pred_region
      %156 = dma.done [#allocation4], 256
    $region29: #{tpu_custom_call.1} parent=1 // pred_fallthru
      _
    %157 = vsyncpa [#allocation3], 1
    %158 = vsyncpa [#allocation6], 1
    %159 = vsyncpa [#allocation4], 1

</llo_original>
